<compile_context>
chip_gen: v7x
topology: tpu7x:2x2x1
jax: 0.10.0
libtpu: 0.0.40
codegen_flags: <defaults>
</compile_context>

<pallas_src>
import functools

import numpy as np
import jax
import jax.numpy as jnp
from jax.experimental import pallas as pl
from jax.experimental.pallas import tpu as pltpu


# ----------------------------------------------------------------------------
# Kernel 1: continuous position bias MLP  (Linear(2,512)+ReLU+Linear(512,H))
# Per-layer constant at inference -- computed ONCE (hoisted out of the forward
# hot path), not per call.
# ----------------------------------------------------------------------------
def _cpb_mlp_kernel(coords_ref, w1_ref, b1_ref, w2_ref, o_ref):
    h = jnp.dot(coords_ref[...], w1_ref[...], preferred_element_type=jnp.float32)
    h = jnp.maximum(h + b1_ref[...], 0.0)
    o_ref[...] = jnp.dot(h, w2_ref[...], preferred_element_type=jnp.float32)


def cpb_mlp_pallas(coords_flat, w1_t, b1, w2_t):
    L = coords_flat.shape[0]
    H = w2_t.shape[1]
    return pl.pallas_call(
        _cpb_mlp_kernel,
        out_shape=jax.ShapeDtypeStruct((L, H), jnp.float32),
    )(coords_flat, w1_t, b1.reshape(1, -1), w2_t)


# ----------------------------------------------------------------------------
# Kernel 2: cosine window attention core (bt windows per grid step, all heads
# batched)
# ----------------------------------------------------------------------------
def _window_attn_kernel(x_ref, y_ref, wq_ref, wkv_ref, vb_ref, seg_ref,
                        scale_ref, bias_ref, wp_ref, pb_ref, o_ref,
                        *, num_heads, head_dim, bt, n):
    f32 = jnp.float32
    bf16 = jnp.bfloat16
    C = num_heads * head_dim
    M = bt * n

    x = x_ref[...].reshape(M, C)          # leading-dim merge only (free)
    y = y_ref[...].reshape(M, C)

    # Projections (bf16 operands on the MXU, f32 accumulate).
    # q has NO bias (module bug: q_bias stays None); k gets a zero bias; v gets v_bias.
    q = jnp.dot(x, wq_ref[...], preferred_element_type=f32)        # (M, C)
    kv = jnp.dot(y, wkv_ref[...], preferred_element_type=f32)      # (M, 2C) fused k|v
    k = kv[:, :C]
    v = kv[:, C:] + vb_ref[...]

    # F.normalize(dim=-1) for ALL heads at once: per-head sum-of-squares via one
    # matmul with the same-head indicator matrix seg (seg[c,c']=1 iff same head),
    # giving an (M, C) result already broadcast across each head's lanes.
    # rsqrt(max(ss, eps^2)) == 1/max(sqrt(ss), eps); the per-head logit scale is
    # folded into the inverse-norm factor via a single (1, C) row vector.
    ss_q = jnp.dot(q * q, seg_ref[...], preferred_element_type=f32)
    ss_k = jnp.dot(k * k, seg_ref[...], preferred_element_type=f32)
    qn = q * (jax.lax.rsqrt(jnp.maximum(ss_q, 1e-24)) * scale_ref[...])
    kn = k * jax.lax.rsqrt(jnp.maximum(ss_k, 1e-24))

    qn = qn.reshape(bt, n, C).astype(bf16)
    kn = kn.reshape(bt, n, C).astype(bf16)
    v3 = v.reshape(bt, n, C).astype(bf16)

    # Gather heads onto a leading batch axis: static lane slices + leading-dim
    # stack only (no minor-dim reshape), then merge (bt, H) into one batch dim
    # so the attention math below is single batched ops.
    def _heads(t):
        th = jnp.stack([t[:, :, h * head_dim:(h + 1) * head_dim]
                        for h in range(num_heads)], axis=1)        # (bt, H, n, hd)
        return th.reshape(bt * num_heads, n, head_dim)             # leading merge

    qh = _heads(qn)
    kh = _heads(kn)
    vh = _heads(v3)

    # One batched QK^T, one bias add, one softmax for all windows & heads.
    attn = jnp.einsum('bqd,bkd->bqk', qh, kh,
                      preferred_element_type=f32)                  # (bt*H, n, n)
    attn = attn.reshape(bt, num_heads, n, n) + bias_ref[...]       # (H,n,n) bcast over bt
    attn = attn - jnp.max(attn, axis=-1, keepdims=True)
    e = jnp.exp(attn)
    p = e * pl.reciprocal(jnp.sum(e, axis=-1, keepdims=True), approx=True)

    p = p.reshape(bt * num_heads, n, n).astype(bf16)
    outh = jnp.einsum('bqk,bkd->bqd', p, vh,
                      preferred_element_type=f32)                  # (bt*H, n, hd)
    outh = outh.reshape(bt, num_heads, n, head_dim)
    out = jnp.concatenate([outh[:, h] for h in range(num_heads)],
                          axis=-1)                                 # (bt, n, C)

    out = jnp.dot(out.reshape(M, C).astype(bf16), wp_ref[...],
                  preferred_element_type=f32) + pb_ref[...]
    o_ref[...] = out.reshape(bt, n, C).astype(o_ref.dtype)


def _pick_windows_per_step(B_, N, C, num_heads, budget_bytes=24 << 20):
    """Largest divisor of B_ whose per-grid-step working set fits a VMEM budget.

    On 1-TC chips (v5e/v6e) this normally yields bt=B_ (grid=(1,)), removing
    per-step pipeline overhead entirely; for large real Swin shapes (or v7x's
    64 MiB VMEM) it backs off. Pass windows_per_step=B_//2 explicitly to split
    the windows across v7x's two TensorCores.
    """
    fixed = (C * C + C * 2 * C + C * C) * 2           # wq / wkv / wp (bf16)
    fixed += C * C * 4 + 3 * C * 4                    # seg matrix + scale/v_bias/p_bias (f32)
    fixed += num_heads * N * N * 4                    # relative position bias (f32)
    for bt in range(B_, 0, -1):
        if B_ % bt:
            continue
        io_blocks = 2 * (2 * bt * N * C * 2 + bt * N * C * 4)   # dbl-buffered x,y (bf16) + out (f32)
        live = 3 * bt * N * C * 4                               # q, k, v in f32
        live += 3 * bt * N * C * 2                              # bf16 head-stacked copies
        live += 2 * bt * num_heads * N * N * 4                  # attention logits + probs
        if fixed + io_blocks + live <= budget_bytes:
            return bt
    return 1


def window_attention_cross_pallas(x, y, wq_t, wkv_t, v_bias, scale_vec,
                                  rel_bias, wp_t, p_bias, *, num_heads,
                                  windows_per_step=None,
                                  vmem_budget_bytes=24 << 20):
    B_, N, C = x.shape
    head_dim = C // num_heads
    if windows_per_step is None:
        windows_per_step = _pick_windows_per_step(B_, N, C, num_heads,
                                                  vmem_budget_bytes)
    assert B_ % windows_per_step == 0
    bt = windows_per_step
    num_steps = B_ // bt

    # bf16 operands for the MXU; all accumulation stays f32 inside the kernel.
    xb = x.astype(jnp.bfloat16)
    yb = y.astype(jnp.bfloat16)
    wq_b = wq_t.astype(jnp.bfloat16)
    wkv_b = wkv_t.astype(jnp.bfloat16)
    wp_b = wp_t.astype(jnp.bfloat16)

    # Same-head indicator matrix for the segment-sum normalization, and the
    # per-head logit scale expanded to a (1, C) row (head h's scale repeated
    # over its head_dim lanes).
    head_id = np.arange(C) // head_dim
    seg = jnp.asarray((head_id[:, None] == head_id[None, :]).astype(np.float32))
    scale_row = jnp.repeat(scale_vec.astype(jnp.float32), head_dim).reshape(1, C)

    kernel = functools.partial(_window_attn_kernel, num_heads=num_heads,
                               head_dim=head_dim, bt=bt, n=N)
    return pl.pallas_call(
        kernel,
        out_shape=jax.ShapeDtypeStruct((B_, N, C), x.dtype),
        grid_spec=pltpu.PrefetchScalarGridSpec(
            num_scalar_prefetch=0,
            grid=(num_steps,),
            in_specs=[
                pl.BlockSpec((bt, N, C), lambda s: (s, 0, 0)),           # x (bf16)
                pl.BlockSpec((bt, N, C), lambda s: (s, 0, 0)),           # y (bf16)
                pl.BlockSpec((C, C), lambda s: (0, 0)),                  # Wq^T (bf16)
                pl.BlockSpec((C, 2 * C), lambda s: (0, 0)),              # Wkv^T (bf16, fused)
                pl.BlockSpec((1, C), lambda s: (0, 0)),                  # v bias (f32)
                pl.BlockSpec((C, C), lambda s: (0, 0)),                  # same-head matrix (f32)
                pl.BlockSpec((1, C), lambda s: (0, 0)),                  # per-head logit scale row
                pl.BlockSpec((num_heads, N, N), lambda s: (0, 0, 0)),    # rel-pos bias (H,N,N)
                pl.BlockSpec((C, C), lambda s: (0, 0)),                  # Wproj^T (bf16)
                pl.BlockSpec((1, C), lambda s: (0, 0)),                  # proj bias (f32)
            ],
            out_specs=pl.BlockSpec((bt, N, C), lambda s: (s, 0, 0)),
        ),
        compiler_params=pltpu.CompilerParams(
            dimension_semantics=("parallel",),
            vmem_limit_bytes=32 * 1024 * 1024),
    )(xb, yb, wq_b, wkv_b, v_bias.reshape(1, C), seg, scale_row,
      rel_bias, wp_b, p_bias.reshape(1, C))


# ----------------------------------------------------------------------------
# Module precompute (buffers from __init__) — plain numpy glue
# ----------------------------------------------------------------------------
def make_relative_coords_table(window_size):
    Wh, Ww = window_size
    rch = np.arange(-(Wh - 1), Wh, dtype=np.float32)
    rcw = np.arange(-(Ww - 1), Ww, dtype=np.float32)
    table = np.stack(np.meshgrid(rch, rcw, indexing="ij"))          # (2, 2Wh-1, 2Ww-1)
    table = table.transpose(1, 2, 0).copy()                         # (2Wh-1, 2Ww-1, 2)
    table[:, :, 0] /= (Wh - 1)
    table[:, :, 1] /= (Ww - 1)
    table *= 8.0
    table = np.sign(table) * np.log2(np.abs(table) + 1.0) / np.log2(8.0)
    return table.reshape(-1, 2).astype(np.float32)                  # (L, 2)


def make_relative_position_index(window_size):
    Wh, Ww = window_size
    coords = np.stack(np.meshgrid(np.arange(Wh), np.arange(Ww), indexing="ij"))
    coords_flatten = coords.reshape(2, -1)
    rel = coords_flatten[:, :, None] - coords_flatten[:, None, :]    # (2, N, N)
    rel = rel.transpose(1, 2, 0).copy()
    rel[:, :, 0] += Wh - 1
    rel[:, :, 1] += Ww - 1
    rel[:, :, 0] *= 2 * Ww - 1
    return rel.sum(-1).astype(np.int32)                              # (N, N)


# ----------------------------------------------------------------------------
# Pure-JAX reference (mirrors the PyTorch forward) for a correctness check
# ----------------------------------------------------------------------------
def reference_forward(x, y, p, window_size, num_heads):
    B_, N, C = x.shape
    hd = C // num_heads
    q = x @ p["wq"].T                                                # no q bias
    kv_bias = jnp.concatenate([jnp.zeros((C,), jnp.float32), p["v_bias"]])
    kv = y @ p["wkv"].T + kv_bias
    q = q.reshape(B_, N, num_heads, hd).transpose(0, 2, 1, 3)
    kv = kv.reshape(B_, N, 2, num_heads, hd).transpose(2, 0, 3, 1, 4)
    k, v = kv[0], kv[1]
    qn = q / jnp.maximum(jnp.linalg.norm(q, axis=-1, keepdims=True), 1e-12)
    kn = k / jnp.maximum(jnp.linalg.norm(k, axis=-1, keepdims=True), 1e-12)
    attn = qn @ jnp.swapaxes(kn, -2, -1)
    logit_scale = jnp.exp(jnp.minimum(p["logit_scale"], jnp.log(1.0 / 0.01)))
    attn = attn * logit_scale
    table = jax.nn.relu(p["coords_table"] @ p["cpb_w1"].T + p["cpb_b1"]) @ p["cpb_w2"].T
    rel_bias = table[p["rel_pos_idx"].reshape(-1)].reshape(N, N, num_heads).transpose(2, 0, 1)
    rel_bias = 16.0 * jax.nn.sigmoid(rel_bias)
    attn = attn + rel_bias[None]
    attn = jax.nn.softmax(attn, axis=-1)
    out = (attn @ v).transpose(0, 2, 1, 3).reshape(B_, N, C)
    return out @ p["wp"].T + p["p_bias"]


if __name__ == "__main__":
    # Small shapes consistent with the module: dim=32, window 4x4 -> N=16, 4 heads.
    dim, num_heads = 32, 4
    window_size = (4, 4)
    N = window_size[0] * window_size[1]
    B_ = 8                                  # num_windows * batch

    key = jax.random.PRNGKey(0)
    ks = jax.random.split(key, 12)
    f32 = jnp.float32

    params = {
        "wq":      0.02 * jax.random.normal(ks[0], (dim, dim), f32),
        "wkv":     0.02 * jax.random.normal(ks[1], (2 * dim, dim), f32),
        "v_bias":  0.02 * jax.random.normal(ks[2], (dim,), f32),
        "wp":      0.02 * jax.random.normal(ks[3], (dim, dim), f32),
        "p_bias":  0.02 * jax.random.normal(ks[4], (dim,), f32),
        "logit_scale": jnp.log(10.0 * jnp.ones((num_heads, 1, 1), f32))
                       + 0.5 * jax.random.normal(ks[5], (num_heads, 1, 1), f32),
        "cpb_w1":  0.02 * jax.random.normal(ks[6], (512, 2), f32),
        "cpb_b1":  0.02 * jax.random.normal(ks[7], (512,), f32),
        "cpb_w2":  0.02 * jax.random.normal(ks[8], (num_heads, 512), f32),
        "coords_table": jnp.asarray(make_relative_coords_table(window_size)),
        "rel_pos_idx":  jnp.asarray(make_relative_position_index(window_size)),
    }

    x = jax.random.normal(ks[9], (B_, N, dim), f32)
    y = jax.random.normal(ks[10], (B_, N, dim), f32)

    # --- precompute (per-layer constant, hoisted out of the forward hot path):
    # relative position bias via the cpb Pallas kernel + XLA gather/sigmoid glue.
    cpb_table = cpb_mlp_pallas(params["coords_table"],
                               params["cpb_w1"].T, params["cpb_b1"],
                               params["cpb_w2"].T)                          # (L, H)
    rel_bias = cpb_table[params["rel_pos_idx"].reshape(-1)]                 # gather (glue)
    rel_bias = rel_bias.reshape(N, N, num_heads).transpose(2, 0, 1)
    rel_bias = 16.0 * jax.nn.sigmoid(rel_bias)                              # (H, N, N)

    # per-head logit scale: exp(clamp(logit_scale, max=log(100)))
    scale_vec = jnp.exp(jnp.minimum(params["logit_scale"].reshape(num_heads),
                                    jnp.log(1.0 / 0.01)))

    # transpose weights to (in, out); k|v stay fused as one (dim, 2*dim) matrix
    wq_t = params["wq"].T
    wkv_t = params["wkv"].T
    wp_t = params["wp"].T

    out = window_attention_cross_pallas(x, y, wq_t, wkv_t,
                                        params["v_bias"], scale_vec, rel_bias,
                                        wp_t, params["p_bias"],
                                        num_heads=num_heads)
    out = jax.block_until_ready(out)

    with jax.default_matmul_precision("highest"):
        ref = jax.block_until_ready(
            reference_forward(x, y, params, window_size, num_heads))

    np.testing.assert_allclose(np.asarray(out), np.asarray(ref),
                               rtol=5e-2, atol=5e-2)
    print("KERNEL_OK")
</pallas_src>

<mosaic_0001>
module attributes {stable_mosaic.version = 11 : i64} {
  func.func @_cpb_mlp_kernel(%arg0: memref<49x2xf32, #tpu.memory_space<vmem>>, %arg1: memref<2x512xf32, #tpu.memory_space<vmem>>, %arg2: memref<1x512xf32, #tpu.memory_space<vmem>>, %arg3: memref<512x4xf32, #tpu.memory_space<vmem>>, %arg4: memref<49x4xf32, #tpu.memory_space<vmem>>) attributes {dimension_semantics = [], scalar_prefetch = 0 : i64, scratch_operands = 0 : i64, tpu.core_type = #tpu.core_type<tc>} {
    %c0 = arith.constant 0 : index
    %c0_0 = arith.constant 0 : index
    %0 = vector.load %arg0[%c0, %c0_0] : memref<49x2xf32, #tpu.memory_space<vmem>>, vector<49x2xf32>
    %c0_1 = arith.constant 0 : index
    %c0_2 = arith.constant 0 : index
    %1 = vector.load %arg1[%c0_1, %c0_2] : memref<2x512xf32, #tpu.memory_space<vmem>>, vector<2x512xf32>
    %cst = arith.constant dense<0.000000e+00> : vector<49x512xf32>
    %2 = tpu.matmul %0, %1, %cst {dimension_numbers = #tpu.dot_dimension_numbers<[1], [0], [0], [1], [0, 0, 1, 1], [], []>} : vector<49x2xf32>, vector<2x512xf32>, vector<49x512xf32> -> vector<49x512xf32>
    %c0_3 = arith.constant 0 : index
    %c0_4 = arith.constant 0 : index
    %3 = vector.load %arg2[%c0_3, %c0_4] : memref<1x512xf32, #tpu.memory_space<vmem>>, vector<1x512xf32>
    %4 = vector.broadcast %3 : vector<1x512xf32> to vector<49x512xf32>
    %5 = arith.addf %2, %4 : vector<49x512xf32>
    %cst_5 = arith.constant 0.000000e+00 : f32
    %6 = vector.broadcast %cst_5 : f32 to vector<49x512xf32>
    %7 = arith.maximumf %5, %6 : vector<49x512xf32>
    %c0_6 = arith.constant 0 : index
    %c0_7 = arith.constant 0 : index
    %8 = vector.load %arg3[%c0_6, %c0_7] : memref<512x4xf32, #tpu.memory_space<vmem>>, vector<512x4xf32>
    %cst_8 = arith.constant dense<0.000000e+00> : vector<49x4xf32>
    %9 = tpu.matmul %7, %8, %cst_8 {dimension_numbers = #tpu.dot_dimension_numbers<[1], [0], [0], [1], [0, 0, 1, 1], [], []>} : vector<49x512xf32>, vector<512x4xf32>, vector<49x4xf32> -> vector<49x4xf32>
    %c0_9 = arith.constant 0 : index
    %c0_10 = arith.constant 0 : index
    %10 = vector.load %arg4[%c0_9, %c0_10] : memref<49x4xf32, #tpu.memory_space<vmem>>, vector<49x4xf32>
    tpu.vector_store %arg4[%c0_9, %c0_10], %9 {strides = array<i32>} : memref<49x4xf32, #tpu.memory_space<vmem>>, vector<49x4xf32>,
    return
  }
}

</mosaic_0001>

<llo_original>
// kernel: tpu_custom_call.1
$region0: #{tpu_custom_call.1}
  #allocation0 [shape = 'u32[]', space=smem, size = 0x4, offset = 0x4, fixed_abs, tag = 'smem constant byte address 0x4 - core index']
  #allocation1 [shape = 'u32[144,128]{1,0:T(1,128)}', space=vmem, size = 0x12000, scoped, tag = 'internal scratch']
  %s0 = inlined_call_operand.vmem [shape: f32[49,2], index: 0, kind: input, shape index: {}]
  %s1 = inlined_call_operand.vmem [shape: f32[2,512], index: 1, kind: input, shape index: {}]
  %s2 = inlined_call_operand.vmem [shape: f32[1,512], index: 2, kind: input, shape index: {}]
  %s3 = inlined_call_operand.vmem [shape: f32[512,4], index: 3, kind: input, shape index: {}]
  %s4 = inlined_call_operand.vmem [shape: f32[49,4], index: 4, kind: output, shape index: {}]
  %s5 = sld [smem:[#allocation0]]
  $region26: #{tpu_custom_call.1} parent=0
    _
  %s7 = ssub.s32 1, %s5
  %s8 = scalar_select 0, %s7, %s5
  // Predicated region
  $region2: #{tpu_custom_call.1} parent=0 // pred_check
    _
  $region3: #{tpu_custom_call.1} parent=0 // pred_check_branch
    %10 = sbr.rel (0) target = $region5
  $region4: #{tpu_custom_call.1} parent=0 // pred_region
    _
  $region5: #{tpu_custom_call.1} parent=0 // pred_fallthru
    _
  // Predicated region
  $region6: #{tpu_custom_call.1} parent=0 // pred_check
    _
  $region7: #{tpu_custom_call.1} parent=0 // pred_check_branch
    %12 = sbr.rel (0) target = $region9
  $region8: #{tpu_custom_call.1} parent=0 // pred_region
    _
  $region9: #{tpu_custom_call.1} parent=0 // pred_fallthru
    _
  // Predicated region
  $region10: #{tpu_custom_call.1} parent=0 // pred_check
    _
  $region11: #{tpu_custom_call.1} parent=0 // pred_check_branch
    %14 = sbr.rel (0) target = $region13
  $region12: #{tpu_custom_call.1} parent=0 // pred_region
    _
  $region13: #{tpu_custom_call.1} parent=0 // pred_fallthru
    _
  // Predicated region
  $region14: #{tpu_custom_call.1} parent=0 // pred_check
    _
  $region15: #{tpu_custom_call.1} parent=0 // pred_check_branch
    %16 = sbr.rel (0) target = $region17
  $region16: #{tpu_custom_call.1} parent=0 // pred_region
    _
  $region17: #{tpu_custom_call.1} parent=0 // pred_fallthru
    _
  %v17 = vld [vmem:[%s0] sm:$0xff]
  %v18 = vld [vmem:[%s0 + $0x8] sm:$0xff]
  %v19 = vld [vmem:[%s0 + $0x10] sm:$0xff]
  %v20 = vld [vmem:[%s0 + $0x18] sm:$0xff]
  %v21 = vld [vmem:[%s0 + $0x20] sm:$0xff]
  %v22 = vld [vmem:[%s0 + $0x28] sm:$0xff]
  %v23 = vld [vmem:[%s0 + $0x30] sm:$0x1]
  %v24 = vld [vmem:[%s1] sm:$0xff]
  %v25 = vld [vmem:[%s2] sm:$0xf]
  %v27 = vlaneseq
  %v28 = vshrl.u32 %v27, 7
  %v29 = vsub.s32 0, %v28
  %v30 = vrot.slane %v25, %v29
  %v31 = vlaneseq
  %v32 = vshrl.u32 %v31, 7
  %v33 = vsub.s32 1, %v32
  %v34 = vrot.slane %v25, %v33
  %v35 = vlaneseq
  %v36 = vshrl.u32 %v35, 7
  %v37 = vsub.s32 2, %v36
  %v38 = vrot.slane %v25, %v37
  %v39 = vlaneseq
  %v40 = vshrl.u32 %v39, 7
  %v41 = vsub.s32 3, %v40
  %v42 = vrot.slane %v25, %v41
  %v48 = vcombine.high %v24, %v24
  %v50 = vunpack.c.l.s4 1983009808
  %v51 = vunpack.c.0.s8 %v50
  %v52 = vlaneseq
  %v53 = vshrl.u32 %v52, 7
  %v54 = vsub.s32 %v51, %v53
  %v55 = vrot.slane %v24, %v54
  %v57 = vunpack.c.l.s4 1983009808
  %v58 = vunpack.c.0.s8 %v57
  %v59 = vlaneseq
  %v60 = vshrl.u32 %v59, 7
  %v61 = vsub.s32 %v58, %v60
  %v62 = vrot.slane %v48, %v61
  %v63 = vcombine.high %v55, %v55
  %v64 = vcombine.high %v62, %v62
  %vm65 = vcmask 15360
  %v67 = vsel %vm65, %v17, 0
  %v70 = vsel %vm65, %v18, 0
  %v73 = vsel %vm65, %v19, 0
  %v76 = vsel %vm65, %v20, 0
  %v79 = vsel %vm65, %v21, 0
  %v82 = vsel %vm65, %v22, 0
  %v85 = vsel %vm65, %v23, 0
  %vm87 = vcmask 1041408
  %v88 = vsel %vm87, %v55, 0
  %v90 = vsel %vm87, %v63, 0
  %v92 = vsel %vm87, %v62, 0
  %v94 = vsel %vm87, %v64, 0
  %96 = vmatprep.subr.mxu0 %v90
  %97 = vmatpush1.msra.mxu0 %v88
  %98 = vmatprep.subr.mxu0 0.0
  %99 = vmatpush1.msra.mxu0 0.0
  %100 = vmatprep.subr.mxu0 0.0
  %101 = vmatpush1.msra.mxu0 0.0
  %102 = vmatprep.subr.mxu0 0.0
  %103 = vmatpush1.msra.mxu0 0.0
  %104 = vmatprep.subr.mxu0 0.0
  %105 = vmatpush1.msra.mxu0 0.0
  %106 = vmatprep.subr.mxu0 0.0
  %107 = vmatpush1.msra.mxu0 0.0
  %108 = vmatprep.subr.mxu0 0.0
  %109 = vmatpush1.msra.mxu0 0.0
  %110 = vmatprep.subr.mxu0 0.0
  %111 = vmatpush1.msra.mxu0 0.0
  %112 = vmatprep.subr.mxu0 0.0
  %113 = vmatpush1.msra.mxu0 0.0
  %114 = vmatprep.subr.mxu0 0.0
  %115 = vmatpush1.msra.mxu0 0.0
  %116 = vmatprep.subr.mxu0 0.0
  %117 = vmatpush1.msra.mxu0 0.0
  %118 = vmatprep.subr.mxu0 0.0
  %119 = vmatpush1.msra.mxu0 0.0
  %120 = vmatprep.subr.mxu0 0.0
  %121 = vmatpush1.msra.mxu0 0.0
  %122 = vmatprep.subr.mxu0 0.0
  %123 = vmatpush1.msra.mxu0 0.0
  %124 = vmatprep.subr.mxu0 0.0
  %125 = vmatpush1.msra.mxu0 0.0
  %126 = vmatprep.subr.mxu0 0.0
  %127 = vmatpush1.msra.mxu0 0.0
  %128 = vmatprep.subr.mxu0 0.0
  %129 = vmatpush1.msra.mxu0 0.0
  %130 = vmatprep.subr.mxu0 0.0
  %131 = vmatpush1.msra.mxu0 0.0
  %132 = vmatprep.subr.mxu0 0.0
  %133 = vmatpush1.msra.mxu0 0.0
  %134 = vmatprep.subr.mxu0 0.0
  %135 = vmatpush1.msra.mxu0 0.0
  %136 = vmatprep.subr.mxu0 0.0
  %137 = vmatpush1.msra.mxu0 0.0
  %138 = vmatprep.subr.mxu0 0.0
  %139 = vmatpush1.msra.mxu0 0.0
  %140 = vmatprep.subr.mxu0 0.0
  %141 = vmatpush1.msra.mxu0 0.0
  %142 = vmatprep.subr.mxu0 0.0
  %143 = vmatpush1.msra.mxu0 0.0
  %144 = vmatprep.subr.mxu0 0.0
  %145 = vmatpush1.msra.mxu0 0.0
  %146 = vmatprep.subr.mxu0 0.0
  %147 = vmatpush1.msra.mxu0 0.0
  %148 = vmatprep.subr.mxu0 0.0
  %149 = vmatpush1.msra.mxu0 0.0
  %150 = vmatprep.subr.mxu0 0.0
  %151 = vmatpush1.msra.mxu0 0.0
  %152 = vmatprep.subr.mxu0 0.0
  %153 = vmatpush1.msra.mxu0 0.0
  %154 = vmatprep.subr.mxu0 0.0
  %155 = vmatpush1.msra.mxu0 0.0
  %156 = vmatprep.subr.mxu0 0.0
  %157 = vmatpush1.msra.mxu0 0.0
  %158 = vmatprep.subr.mxu0 0.0
  %159 = vmatpush1.msra.mxu0 0.0
  %160 = vmatprep.mubr.f32.mxu0 0.0
  %161 = vmatmul.mubr.f32.gmra.mrb[0].mxu0 %v67
  %v162 = vpop.f32.mrb[0].mxu0
  %v163 = vadd.f32 %v30, %v162
  %v164 = vpop.f32.mrb[0].mxu0
  %v165 = vadd.f32 %v34, %v164
  %166 = vmatprep.mubr.f32.mxu0 0.0
  %167 = vmatmul.mubr.f32.gmra.mrb[0].mxu0 %v70
  %v168 = vpop.f32.mrb[0].mxu0
  %v169 = vadd.f32 %v30, %v168
  %v170 = vpop.f32.mrb[0].mxu0
  %v171 = vadd.f32 %v34, %v170
  %172 = vmatprep.mubr.f32.mxu0 0.0
  %173 = vmatmul.mubr.f32.gmra.mrb[0].mxu0 %v73
  %v174 = vpop.f32.mrb[0].mxu0
  %v175 = vadd.f32 %v30, %v174
  %v176 = vpop.f32.mrb[0].mxu0
  %v177 = vadd.f32 %v34, %v176
  %178 = vmatprep.mubr.f32.mxu0 0.0
  %179 = vmatmul.mubr.f32.gmra.mrb[0].mxu0 %v76
  %v180 = vpop.f32.mrb[0].mxu0
  %v181 = vadd.f32 %v30, %v180
  %v182 = vpop.f32.mrb[0].mxu0
  %v183 = vadd.f32 %v34, %v182
  %184 = vmatprep.mubr.f32.mxu0 0.0
  %185 = vmatmul.mubr.f32.gmra.mrb[0].mxu0 %v79
  %v186 = vpop.f32.mrb[0].mxu0
  %v187 = vadd.f32 %v30, %v186
  %v188 = vpop.f32.mrb[0].mxu0
  %v189 = vadd.f32 %v34, %v188
  %190 = vmatprep.mubr.f32.mxu0 0.0
  %191 = vmatmul.mubr.f32.gmra.mrb[0].mxu0 %v82
  %v192 = vpop.f32.mrb[0].mxu0
  %v193 = vadd.f32 %v30, %v192
  %v194 = vpop.f32.mrb[0].mxu0
  %v195 = vadd.f32 %v34, %v194
  %196 = vmatprep.mubr.f32.mxu0 0.0
  %197 = vmatmul.mubr.f32.gmra.mrb[0].mxu0 %v85
  %v198 = vpop.f32.mrb[0].mxu0
  %v199 = vadd.f32 %v30, %v198
  %v200 = vpop.f32.mrb[0].mxu0
  %v201 = vadd.f32 %v34, %v200
  %202 = vdwg.mxu0
  %203 = vmatprep.subr.mxu0 %v94
  %204 = vmatpush1.msra.mxu0 %v92
  %205 = vmatprep.subr.mxu0 0.0
  %206 = vmatpush1.msra.mxu0 0.0
  %207 = vmatprep.subr.mxu0 0.0
  %208 = vmatpush1.msra.mxu0 0.0
  %209 = vmatprep.subr.mxu0 0.0
  %210 = vmatpush1.msra.mxu0 0.0
  %211 = vmatprep.subr.mxu0 0.0
  %212 = vmatpush1.msra.mxu0 0.0
  %213 = vmatprep.subr.mxu0 0.0
  %214 = vmatpush1.msra.mxu0 0.0
  %215 = vmatprep.subr.mxu0 0.0
  %216 = vmatpush1.msra.mxu0 0.0
  %217 = vmatprep.subr.mxu0 0.0
  %218 = vmatpush1.msra.mxu0 0.0
  %219 = vmatprep.subr.mxu0 0.0
  %220 = vmatpush1.msra.mxu0 0.0
  %221 = vmatprep.subr.mxu0 0.0
  %222 = vmatpush1.msra.mxu0 0.0
  %223 = vmatprep.subr.mxu0 0.0
  %224 = vmatpush1.msra.mxu0 0.0
  %225 = vmatprep.subr.mxu0 0.0
  %226 = vmatpush1.msra.mxu0 0.0
  %227 = vmatprep.subr.mxu0 0.0
  %228 = vmatpush1.msra.mxu0 0.0
  %229 = vmatprep.subr.mxu0 0.0
  %230 = vmatpush1.msra.mxu0 0.0
  %231 = vmatprep.subr.mxu0 0.0
  %232 = vmatpush1.msra.mxu0 0.0
  %233 = vmatprep.subr.mxu0 0.0
  %234 = vmatpush1.msra.mxu0 0.0
  %235 = vmatprep.subr.mxu0 0.0
  %236 = vmatpush1.msra.mxu0 0.0
  %237 = vmatprep.subr.mxu0 0.0
  %238 = vmatpush1.msra.mxu0 0.0
  %239 = vmatprep.subr.mxu0 0.0
  %240 = vmatpush1.msra.mxu0 0.0
  %241 = vmatprep.subr.mxu0 0.0
  %242 = vmatpush1.msra.mxu0 0.0
  %243 = vmatprep.subr.mxu0 0.0
  %244 = vmatpush1.msra.mxu0 0.0
  %245 = vmatprep.subr.mxu0 0.0
  %246 = vmatpush1.msra.mxu0 0.0
  %247 = vmatprep.subr.mxu0 0.0
  %248 = vmatpush1.msra.mxu0 0.0
  %249 = vmatprep.subr.mxu0 0.0
  %250 = vmatpush1.msra.mxu0 0.0
  %251 = vmatprep.subr.mxu0 0.0
  %252 = vmatpush1.msra.mxu0 0.0
  %253 = vmatprep.subr.mxu0 0.0
  %254 = vmatpush1.msra.mxu0 0.0
  %255 = vmatprep.subr.mxu0 0.0
  %256 = vmatpush1.msra.mxu0 0.0
  %257 = vmatprep.subr.mxu0 0.0
  %258 = vmatpush1.msra.mxu0 0.0
  %259 = vmatprep.subr.mxu0 0.0
  %260 = vmatpush1.msra.mxu0 0.0
  %261 = vmatprep.subr.mxu0 0.0
  %262 = vmatpush1.msra.mxu0 0.0
  %263 = vmatprep.subr.mxu0 0.0
  %264 = vmatpush1.msra.mxu0 0.0
  %265 = vmatprep.subr.mxu0 0.0
  %266 = vmatpush1.msra.mxu0 0.0
  %267 = vmatprep.mubr.f32.mxu0 0.0
  %268 = vmatmul.mubr.f32.gmra.mrb[0].mxu0 %v67
  %v269 = vpop.f32.mrb[0].mxu0
  %v270 = vadd.f32 %v38, %v269
  %v271 = vpop.f32.mrb[0].mxu0
  %v272 = vadd.f32 %v42, %v271
  %273 = vmatprep.mubr.f32.mxu0 0.0
  %274 = vmatmul.mubr.f32.gmra.mrb[0].mxu0 %v70
  %v275 = vpop.f32.mrb[0].mxu0
  %v276 = vadd.f32 %v38, %v275
  %v277 = vpop.f32.mrb[0].mxu0
  %v278 = vadd.f32 %v42, %v277
  %279 = vmatprep.mubr.f32.mxu0 0.0
  %280 = vmatmul.mubr.f32.gmra.mrb[0].mxu0 %v73
  %v281 = vpop.f32.mrb[0].mxu0
  %v282 = vadd.f32 %v38, %v281
  %v283 = vpop.f32.mrb[0].mxu0
  %v284 = vadd.f32 %v42, %v283
  %285 = vmatprep.mubr.f32.mxu0 0.0
  %286 = vmatmul.mubr.f32.gmra.mrb[0].mxu0 %v76
  %v287 = vpop.f32.mrb[0].mxu0
  %v288 = vadd.f32 %v38, %v287
  %v289 = vpop.f32.mrb[0].mxu0
  %v290 = vadd.f32 %v42, %v289
  %291 = vmatprep.mubr.f32.mxu0 0.0
  %292 = vmatmul.mubr.f32.gmra.mrb[0].mxu0 %v79
  %v293 = vpop.f32.mrb[0].mxu0
  %v294 = vadd.f32 %v38, %v293
  %v295 = vpop.f32.mrb[0].mxu0
  %v296 = vadd.f32 %v42, %v295
  %297 = vmatprep.mubr.f32.mxu0 0.0
  %298 = vmatmul.mubr.f32.gmra.mrb[0].mxu0 %v82
  %v299 = vpop.f32.mrb[0].mxu0
  %v300 = vadd.f32 %v38, %v299
  %v301 = vpop.f32.mrb[0].mxu0
  %v302 = vadd.f32 %v42, %v301
  %303 = vmatprep.mubr.f32.mxu0 0.0
  %304 = vmatmul.mubr.f32.gmra.mrb[0].mxu0 %v85
  %v305 = vpop.f32.mrb[0].mxu0
  %v306 = vadd.f32 %v38, %v305
  %v307 = vpop.f32.mrb[0].mxu0
  %v308 = vadd.f32 %v42, %v307
  %309 = vdwg.mxu0
  %v310 = vmax.f32 %v163, 0.0
  %v311 = vmax.f32 %v165, 0.0
  %v312 = vmax.f32 %v270, 0.0
  %v313 = vmax.f32 %v272, 0.0
  %v314 = vmax.f32 %v169, 0.0
  %v315 = vmax.f32 %v171, 0.0
  %v316 = vmax.f32 %v276, 0.0
  %v317 = vmax.f32 %v278, 0.0
  %v318 = vmax.f32 %v175, 0.0
  %v319 = vmax.f32 %v177, 0.0
  %v320 = vmax.f32 %v282, 0.0
  %v321 = vmax.f32 %v284, 0.0
  %v322 = vmax.f32 %v181, 0.0
  %v323 = vmax.f32 %v183, 0.0
  %v324 = vmax.f32 %v288, 0.0
  %v325 = vmax.f32 %v290, 0.0
  %v326 = vmax.f32 %v187, 0.0
  %v327 = vmax.f32 %v189, 0.0
  %v328 = vmax.f32 %v294, 0.0
  %v329 = vmax.f32 %v296, 0.0
  %v330 = vmax.f32 %v193, 0.0
  %v331 = vmax.f32 %v195, 0.0
  %v332 = vmax.f32 %v300, 0.0
  %v333 = vmax.f32 %v302, 0.0
  %v334 = vmax.f32 %v199, 0.0
  %v335 = vmax.f32 %v201, 0.0
  %v336 = vmax.f32 %v306, 0.0
  %v337 = vmax.f32 %v308, 0.0
  %v338 = vld [vmem:[%s3] sm:$0xff]
  %v339 = vld [vmem:[%s3 + $0x8] sm:$0xff]
  %v340 = vld [vmem:[%s3 + $0x10] sm:$0xff]
  %v341 = vld [vmem:[%s3 + $0x18] sm:$0xff]
  %v342 = vld [vmem:[%s3 + $0x20] sm:$0xff]
  %v343 = vld [vmem:[%s3 + $0x28] sm:$0xff]
  %v344 = vld [vmem:[%s3 + $0x30] sm:$0xff]
  %v345 = vld [vmem:[%s3 + $0x38] sm:$0xff]
  %v346 = vld [vmem:[%s3 + $0x40] sm:$0xff]
  %v347 = vld [vmem:[%s3 + $0x48] sm:$0xff]
  %v348 = vld [vmem:[%s3 + $0x50] sm:$0xff]
  %v349 = vld [vmem:[%s3 + $0x58] sm:$0xff]
  %v350 = vld [vmem:[%s3 + $0x60] sm:$0xff]
  %v351 = vld [vmem:[%s3 + $0x68] sm:$0xff]
  %v352 = vld [vmem:[%s3 + $0x70] sm:$0xff]
  %v353 = vld [vmem:[%s3 + $0x78] sm:$0xff]
  %v354 = vld [vmem:[%s3 + $0x80] sm:$0xff]
  %v355 = vld [vmem:[%s3 + $0x88] sm:$0xff]
  %v356 = vld [vmem:[%s3 + $0x90] sm:$0xff]
  %v357 = vld [vmem:[%s3 + $0x98] sm:$0xff]
  %v358 = vld [vmem:[%s3 + $0xa0] sm:$0xff]
  %v359 = vld [vmem:[%s3 + $0xa8] sm:$0xff]
  %v360 = vld [vmem:[%s3 + $0xb0] sm:$0xff]
  %v361 = vld [vmem:[%s3 + $0xb8] sm:$0xff]
  %v362 = vld [vmem:[%s3 + $0xc0] sm:$0xff]
  %v363 = vld [vmem:[%s3 + $0xc8] sm:$0xff]
  %v364 = vld [vmem:[%s3 + $0xd0] sm:$0xff]
  %v365 = vld [vmem:[%s3 + $0xd8] sm:$0xff]
  %v366 = vld [vmem:[%s3 + $0xe0] sm:$0xff]
  %v367 = vld [vmem:[%s3 + $0xe8] sm:$0xff]
  %v368 = vld [vmem:[%s3 + $0xf0] sm:$0xff]
  %v369 = vld [vmem:[%s3 + $0xf8] sm:$0xff]
  %v370 = vld [vmem:[%s3 + $0x100] sm:$0xff]
  %v371 = vld [vmem:[%s3 + $0x108] sm:$0xff]
  %v372 = vld [vmem:[%s3 + $0x110] sm:$0xff]
  %v373 = vld [vmem:[%s3 + $0x118] sm:$0xff]
  %v374 = vld [vmem:[%s3 + $0x120] sm:$0xff]
  %v375 = vld [vmem:[%s3 + $0x128] sm:$0xff]
  %v376 = vld [vmem:[%s3 + $0x130] sm:$0xff]
  %v377 = vld [vmem:[%s3 + $0x138] sm:$0xff]
  %v378 = vld [vmem:[%s3 + $0x140] sm:$0xff]
  %v379 = vld [vmem:[%s3 + $0x148] sm:$0xff]
  %v380 = vld [vmem:[%s3 + $0x150] sm:$0xff]
  %v381 = vld [vmem:[%s3 + $0x158] sm:$0xff]
  %v382 = vld [vmem:[%s3 + $0x160] sm:$0xff]
  %v383 = vld [vmem:[%s3 + $0x168] sm:$0xff]
  %v384 = vld [vmem:[%s3 + $0x170] sm:$0xff]
  %v385 = vld [vmem:[%s3 + $0x178] sm:$0xff]
  %v386 = vld [vmem:[%s3 + $0x180] sm:$0xff]
  %v387 = vld [vmem:[%s3 + $0x188] sm:$0xff]
  %v388 = vld [vmem:[%s3 + $0x190] sm:$0xff]
  %v389 = vld [vmem:[%s3 + $0x198] sm:$0xff]
  %v390 = vld [vmem:[%s3 + $0x1a0] sm:$0xff]
  %v391 = vld [vmem:[%s3 + $0x1a8] sm:$0xff]
  %v392 = vld [vmem:[%s3 + $0x1b0] sm:$0xff]
  %v393 = vld [vmem:[%s3 + $0x1b8] sm:$0xff]
  %v394 = vld [vmem:[%s3 + $0x1c0] sm:$0xff]
  %v395 = vld [vmem:[%s3 + $0x1c8] sm:$0xff]
  %v396 = vld [vmem:[%s3 + $0x1d0] sm:$0xff]
  %v397 = vld [vmem:[%s3 + $0x1d8] sm:$0xff]
  %v398 = vld [vmem:[%s3 + $0x1e0] sm:$0xff]
  %v399 = vld [vmem:[%s3 + $0x1e8] sm:$0xff]
  %v400 = vld [vmem:[%s3 + $0x1f0] sm:$0xff]
  %v401 = vld [vmem:[%s3 + $0x1f8] sm:$0xff]
  %402 = vmatprep.subr.mxu0 0.0
  %403 = vmatpush1.msra.mxu0 %v338
  %404 = vmatprep.subr.mxu0 0.0
  %405 = vmatpush1.msra.mxu0 %v339
  %406 = vmatprep.subr.mxu0 0.0
  %407 = vmatpush1.msra.mxu0 %v340
  %408 = vmatprep.subr.mxu0 0.0
  %409 = vmatpush1.msra.mxu0 %v341
  %410 = vmatprep.subr.mxu0 0.0
  %411 = vmatpush1.msra.mxu0 %v342
  %412 = vmatprep.subr.mxu0 0.0
  %413 = vmatpush1.msra.mxu0 %v343
  %414 = vmatprep.subr.mxu0 0.0
  %415 = vmatpush1.msra.mxu0 %v344
  %416 = vmatprep.subr.mxu0 0.0
  %417 = vmatpush1.msra.mxu0 %v345
  %418 = vmatprep.subr.mxu0 0.0
  %419 = vmatpush1.msra.mxu0 %v346
  %420 = vmatprep.subr.mxu0 0.0
  %421 = vmatpush1.msra.mxu0 %v347
  %422 = vmatprep.subr.mxu0 0.0
  %423 = vmatpush1.msra.mxu0 %v348
  %424 = vmatprep.subr.mxu0 0.0
  %425 = vmatpush1.msra.mxu0 %v349
  %426 = vmatprep.subr.mxu0 0.0
  %427 = vmatpush1.msra.mxu0 %v350
  %428 = vmatprep.subr.mxu0 0.0
  %429 = vmatpush1.msra.mxu0 %v351
  %430 = vmatprep.subr.mxu0 0.0
  %431 = vmatpush1.msra.mxu0 %v352
  %432 = vmatprep.subr.mxu0 0.0
  %433 = vmatpush1.msra.mxu0 %v353
  %434 = vmatprep.subr.mxu0 0.0
  %435 = vmatpush1.msra.mxu0 %v354
  %436 = vmatprep.subr.mxu0 0.0
  %437 = vmatpush1.msra.mxu0 %v355
  %438 = vmatprep.subr.mxu0 0.0
  %439 = vmatpush1.msra.mxu0 %v356
  %440 = vmatprep.subr.mxu0 0.0
  %441 = vmatpush1.msra.mxu0 %v357
  %442 = vmatprep.subr.mxu0 0.0
  %443 = vmatpush1.msra.mxu0 %v358
  %444 = vmatprep.subr.mxu0 0.0
  %445 = vmatpush1.msra.mxu0 %v359
  %446 = vmatprep.subr.mxu0 0.0
  %447 = vmatpush1.msra.mxu0 %v360
  %448 = vmatprep.subr.mxu0 0.0
  %449 = vmatpush1.msra.mxu0 %v361
  %450 = vmatprep.subr.mxu0 0.0
  %451 = vmatpush1.msra.mxu0 %v362
  %452 = vmatprep.subr.mxu0 0.0
  %453 = vmatpush1.msra.mxu0 %v363
  %454 = vmatprep.subr.mxu0 0.0
  %455 = vmatpush1.msra.mxu0 %v364
  %456 = vmatprep.subr.mxu0 0.0
  %457 = vmatpush1.msra.mxu0 %v365
  %458 = vmatprep.subr.mxu0 0.0
  %459 = vmatpush1.msra.mxu0 %v366
  %460 = vmatprep.subr.mxu0 0.0
  %461 = vmatpush1.msra.mxu0 %v367
  %462 = vmatprep.subr.mxu0 0.0
  %463 = vmatpush1.msra.mxu0 %v368
  %464 = vmatprep.subr.mxu0 0.0
  %465 = vmatpush1.msra.mxu0 %v369
  %466 = vmatprep.mubr.f32.mxu0 %v311
  %467 = vmatmul.mubr.f32.gmra.mrb[0].mxu0 %v310
  %v468 = vpop.f32.mrb[0].mxu0
  %v469 = vadd.f32 0.0, %v468
  %v470 = vpop.f32.mrb[0].mxu0
  %471 = vmatprep.mubr.f32.mxu0 %v315
  %472 = vmatmul.mubr.f32.gmra.mrb[0].mxu0 %v314
  %v473 = vpop.f32.mrb[0].mxu0
  %v474 = vadd.f32 0.0, %v473
  %v475 = vpop.f32.mrb[0].mxu0
  %476 = vmatprep.mubr.f32.mxu0 %v319
  %477 = vmatmul.mubr.f32.gmra.mrb[0].mxu0 %v318
  %v478 = vpop.f32.mrb[0].mxu0
  %v479 = vadd.f32 0.0, %v478
  %v480 = vpop.f32.mrb[0].mxu0
  %481 = vmatprep.mubr.f32.mxu0 %v323
  %482 = vmatmul.mubr.f32.gmra.mrb[0].mxu0 %v322
  %v483 = vpop.f32.mrb[0].mxu0
  %v484 = vadd.f32 0.0, %v483
  %v485 = vpop.f32.mrb[0].mxu0
  %486 = vmatprep.mubr.f32.mxu0 %v327
  %487 = vmatmul.mubr.f32.gmra.mrb[0].mxu0 %v326
  %v488 = vpop.f32.mrb[0].mxu0
  %v489 = vadd.f32 0.0, %v488
  %v490 = vpop.f32.mrb[0].mxu0
  %491 = vmatprep.mubr.f32.mxu0 %v331
  %492 = vmatmul.mubr.f32.gmra.mrb[0].mxu0 %v330
  %v493 = vpop.f32.mrb[0].mxu0
  %v494 = vadd.f32 0.0, %v493
  %v495 = vpop.f32.mrb[0].mxu0
  %496 = vmatprep.mubr.f32.mxu0 %v335
  %497 = vmatmul.mubr.f32.gmra.mrb[0].mxu0 %v334
  %v498 = vpop.f32.mrb[0].mxu0
  %v499 = vadd.f32 0.0, %v498
  %v500 = vpop.f32.mrb[0].mxu0
  %501 = vdwg.mxu0
  %502 = vmatprep.subr.mxu0 0.0
  %503 = vmatpush1.msra.mxu0 %v370
  %504 = vmatprep.subr.mxu0 0.0
  %505 = vmatpush1.msra.mxu0 %v371
  %506 = vmatprep.subr.mxu0 0.0
  %507 = vmatpush1.msra.mxu0 %v372
  %508 = vmatprep.subr.mxu0 0.0
  %509 = vmatpush1.msra.mxu0 %v373
  %510 = vmatprep.subr.mxu0 0.0
  %511 = vmatpush1.msra.mxu0 %v374
  %512 = vmatprep.subr.mxu0 0.0
  %513 = vmatpush1.msra.mxu0 %v375
  %514 = vmatprep.subr.mxu0 0.0
  %515 = vmatpush1.msra.mxu0 %v376
  %516 = vmatprep.subr.mxu0 0.0
  %517 = vmatpush1.msra.mxu0 %v377
  %518 = vmatprep.subr.mxu0 0.0
  %519 = vmatpush1.msra.mxu0 %v378
  %520 = vmatprep.subr.mxu0 0.0
  %521 = vmatpush1.msra.mxu0 %v379
  %522 = vmatprep.subr.mxu0 0.0
  %523 = vmatpush1.msra.mxu0 %v380
  %524 = vmatprep.subr.mxu0 0.0
  %525 = vmatpush1.msra.mxu0 %v381
  %526 = vmatprep.subr.mxu0 0.0
  %527 = vmatpush1.msra.mxu0 %v382
  %528 = vmatprep.subr.mxu0 0.0
  %529 = vmatpush1.msra.mxu0 %v383
  %530 = vmatprep.subr.mxu0 0.0
  %531 = vmatpush1.msra.mxu0 %v384
  %532 = vmatprep.subr.mxu0 0.0
  %533 = vmatpush1.msra.mxu0 %v385
  %534 = vmatprep.subr.mxu0 0.0
  %535 = vmatpush1.msra.mxu0 %v386
  %536 = vmatprep.subr.mxu0 0.0
  %537 = vmatpush1.msra.mxu0 %v387
  %538 = vmatprep.subr.mxu0 0.0
  %539 = vmatpush1.msra.mxu0 %v388
  %540 = vmatprep.subr.mxu0 0.0
  %541 = vmatpush1.msra.mxu0 %v389
  %542 = vmatprep.subr.mxu0 0.0
  %543 = vmatpush1.msra.mxu0 %v390
  %544 = vmatprep.subr.mxu0 0.0
  %545 = vmatpush1.msra.mxu0 %v391
  %546 = vmatprep.subr.mxu0 0.0
  %547 = vmatpush1.msra.mxu0 %v392
  %548 = vmatprep.subr.mxu0 0.0
  %549 = vmatpush1.msra.mxu0 %v393
  %550 = vmatprep.subr.mxu0 0.0
  %551 = vmatpush1.msra.mxu0 %v394
  %552 = vmatprep.subr.mxu0 0.0
  %553 = vmatpush1.msra.mxu0 %v395
  %554 = vmatprep.subr.mxu0 0.0
  %555 = vmatpush1.msra.mxu0 %v396
  %556 = vmatprep.subr.mxu0 0.0
  %557 = vmatpush1.msra.mxu0 %v397
  %558 = vmatprep.subr.mxu0 0.0
  %559 = vmatpush1.msra.mxu0 %v398
  %560 = vmatprep.subr.mxu0 0.0
  %561 = vmatpush1.msra.mxu0 %v399
  %562 = vmatprep.subr.mxu0 0.0
  %563 = vmatpush1.msra.mxu0 %v400
  %564 = vmatprep.subr.mxu0 0.0
  %565 = vmatpush1.msra.mxu0 %v401
  %566 = vmatprep.mubr.f32.mxu0 %v313
  %567 = vmatmul.mubr.f32.gmra.mrb[0].mxu0 %v312
  %v568 = vpop.f32.mrb[0].mxu0
  %v569 = vadd.f32 %v469, %v568
  %v570 = vpop.f32.mrb[0].mxu0
  %571 = vmatprep.mubr.f32.mxu0 %v317
  %572 = vmatmul.mubr.f32.gmra.mrb[0].mxu0 %v316
  %v573 = vpop.f32.mrb[0].mxu0
  %v574 = vadd.f32 %v474, %v573
  %v575 = vpop.f32.mrb[0].mxu0
  %576 = vmatprep.mubr.f32.mxu0 %v321
  %577 = vmatmul.mubr.f32.gmra.mrb[0].mxu0 %v320
  %v578 = vpop.f32.mrb[0].mxu0
  %v579 = vadd.f32 %v479, %v578
  %v580 = vpop.f32.mrb[0].mxu0
  %581 = vmatprep.mubr.f32.mxu0 %v325
  %582 = vmatmul.mubr.f32.gmra.mrb[0].mxu0 %v324
  %v583 = vpop.f32.mrb[0].mxu0
  %v584 = vadd.f32 %v484, %v583
  %v585 = vpop.f32.mrb[0].mxu0
  %586 = vmatprep.mubr.f32.mxu0 %v329
  %587 = vmatmul.mubr.f32.gmra.mrb[0].mxu0 %v328
  %v588 = vpop.f32.mrb[0].mxu0
  %v589 = vadd.f32 %v489, %v588
  %v590 = vpop.f32.mrb[0].mxu0
  %591 = vmatprep.mubr.f32.mxu0 %v333
  %592 = vmatmul.mubr.f32.gmra.mrb[0].mxu0 %v332
  %v593 = vpop.f32.mrb[0].mxu0
  %v594 = vadd.f32 %v494, %v593
  %v595 = vpop.f32.mrb[0].mxu0
  %596 = vmatprep.mubr.f32.mxu0 %v337
  %597 = vmatmul.mubr.f32.gmra.mrb[0].mxu0 %v336
  %v598 = vpop.f32.mrb[0].mxu0
  %v599 = vadd.f32 %v499, %v598
  %v600 = vpop.f32.mrb[0].mxu0
  %601 = vdwg.mxu0
  %vm602 = vcmask 31744
  %603 = vst.msk [vmem:[%s4] sm:$0xff] %vm602, %v569
  %604 = vst.msk [vmem:[%s4 + $0x8] sm:$0xff] %vm602, %v574
  %605 = vst.msk [vmem:[%s4 + $0x10] sm:$0xff] %vm602, %v579
  %606 = vst.msk [vmem:[%s4 + $0x18] sm:$0xff] %vm602, %v584
  %607 = vst.msk [vmem:[%s4 + $0x20] sm:$0xff] %vm602, %v589
  %608 = vst.msk [vmem:[%s4 + $0x28] sm:$0xff] %vm602, %v594
  %vm609 = vcmask 24576
  %610 = vst.msk [vmem:[%s4 + $0x30] sm:$0x1] %vm609, %v599
  // Predicated region
  $region18: #{tpu_custom_call.1} parent=0 // pred_check
    _
  $region19: #{tpu_custom_call.1} parent=0 // pred_check_branch
    %612 = sbr.rel (0) target = $region21
  $region20: #{tpu_custom_call.1} parent=0 // pred_region
    _
  $region21: #{tpu_custom_call.1} parent=0 // pred_fallthru
    _
  // Predicated region
  $region22: #{tpu_custom_call.1} parent=0 // pred_check
    _
  $region23: #{tpu_custom_call.1} parent=0 // pred_check_branch
    %614 = sbr.rel (0) target = $region25
  $region24: #{tpu_custom_call.1} parent=0 // pred_region
    _
  $region25: #{tpu_custom_call.1} parent=0 // pred_fallthru
    _

</llo_original>
